<compile_context>
chip_gen: v6e
topology: v6e:2x2x1
jax: 0.10.0
libtpu: 0.0.40
codegen_flags: <defaults>
</compile_context>

<pallas_src>
import functools

import jax
import jax.numpy as jnp
from jax.experimental import pallas as pl
from jax.experimental.pallas import tpu as pltpu


def _cos_loss_kernel(x_ref, y_ref, o_ref, acc_ref, *,
                     threshold, n_valid, bn, steps_per_core):
    c = pl.program_id(0)          # "parallel" axis (TensorCore split on v7x)
    i = pl.program_id(1)          # "arbitrary" axis (reduction over row blocks)

    @pl.when(i == 0)
    def _():
        acc_ref[...] = jnp.zeros_like(acc_ref)

    x = x_ref[...].astype(jnp.float32)      # (bn, D)
    y = y_ref[...].astype(jnp.float32)

    # Per-row reductions along the embedding (lane) axis.
    dot = jnp.sum(x * y, axis=-1, keepdims=True)    # (bn, 1)
    nx2 = jnp.sum(x * x, axis=-1, keepdims=True)    # (bn, 1)
    ny2 = jnp.sum(y * y, axis=-1, keepdims=True)    # (bn, 1)

    # PyTorch cosine_similarity: dot / (max(|x|, eps) * max(|y|, eps)), eps=1e-8.
    # Equivalent form with one rsqrt (norms are >= 0): eps^2 = 1e-16.
    eps2 = jnp.float32(1e-16)
    inv = jax.lax.rsqrt(jnp.maximum(nx2, eps2) * jnp.maximum(ny2, eps2))
    hinge = jnp.maximum(dot * inv - jnp.float32(threshold), 0.0)

    # Mask rows beyond the real input (partial last block / clamped blocks).
    logical_block = c * steps_per_core + i
    row = logical_block * bn + jax.lax.broadcasted_iota(jnp.int32, hinge.shape, 0)
    acc_ref[...] += jnp.where(row < n_valid, hinge, 0.0)

    @pl.when(i == pl.num_programs(1) - 1)
    def _():
        # Single reduction to a scalar per core; replicate into the out block.
        o_ref[...] = jnp.full((1, 8, 128), jnp.sum(acc_ref[...]),
                              dtype=jnp.float32)


def temporal_consistency_loss(original_embeddings, unlearned_embeddings,
                              threshold=0.7):
    assert original_embeddings.shape == unlearned_embeddings.shape
    D = original_embeddings.shape[-1]
    x = original_embeddings.reshape(-1, D)
    y = unlearned_embeddings.reshape(-1, D)
    N = x.shape[0]
    if N == 0:                                # torch .mean() of empty -> NaN
        return jnp.float32(jnp.nan)

    # Row tile from a VMEM budget: ~2 MiB per input block (2 inputs x
    # 2 pipeline buffers ~= 8 MiB -> safe on v5e/v6e/v7x scoped VMEM).
    itemsize = x.dtype.itemsize
    target_block_bytes = 2 * 1024 * 1024
    bn = max(8, min(8192, target_block_bytes // (D * itemsize)))
    bn -= bn % 8                              # sublane multiple
    if bn >= N:
        bn = N                                # single full-extent block
    n_blocks = (N + bn - 1) // bn

    # Shard row blocks across the two TensorCores on v7x; no-op on 1-TC chips.
    nc = 2 if n_blocks >= 2 else 1
    steps = (n_blocks + nc - 1) // nc
    need_clamp = nc * steps > n_blocks

    def in_map(c, i):
        b = c * steps + i
        if need_clamp:                        # trace-time branch
            b = jnp.minimum(b, n_blocks - 1)  # re-read last block; mask zeroes it
        return (b, 0)

    kernel = functools.partial(
        _cos_loss_kernel, threshold=float(threshold), n_valid=N,
        bn=bn, steps_per_core=steps)

    out = pl.pallas_call(
        kernel,
        out_shape=jax.ShapeDtypeStruct((nc, 8, 128), jnp.float32),
        grid_spec=pltpu.PrefetchScalarGridSpec(
            num_scalar_prefetch=0,
            grid=(nc, steps),
            in_specs=[
                pl.BlockSpec((bn, D), in_map),
                pl.BlockSpec((bn, D), in_map),
            ],
            out_specs=pl.BlockSpec((1, 8, 128), lambda c, i: (c, 0, 0)),
            scratch_shapes=[pltpu.VMEM((bn, 1), jnp.float32)],
        ),
        compiler_params=pltpu.CompilerParams(
            dimension_semantics=("parallel", "arbitrary"),
            vmem_limit_bytes=32 * 1024 * 1024),
    )(x, y)

    # Combine per-core partial sums and normalize.
    return jnp.sum(out[:, 0, 0]) / jnp.float32(N)


def _reference_loss(orig, unl, threshold):
    d = orig.shape[-1]
    xr = orig.reshape(-1, d).astype(jnp.float32)
    yr = unl.reshape(-1, d).astype(jnp.float32)
    eps = jnp.float32(1e-8)
    nx = jnp.maximum(jnp.linalg.norm(xr, axis=-1), eps)
    ny = jnp.maximum(jnp.linalg.norm(yr, axis=-1), eps)
    cos = jnp.sum(xr * yr, axis=-1) / (nx * ny)
    return jnp.mean(jnp.maximum(cos - threshold, 0.0))


if __name__ == "__main__":
    key = jax.random.PRNGKey(0)
    k1, k2, k3, k4 = jax.random.split(key, 4)

    # Case 1: small embeddings (batch=2, seq=16, hidden=32) -> single block.
    orig = jax.random.normal(k1, (2, 16, 32), dtype=jnp.float32)
    unl = orig + 0.1 * jax.random.normal(k2, (2, 16, 32), dtype=jnp.float32)
    loss = jax.block_until_ready(temporal_consistency_loss(orig, unl, 0.7))
    ref = _reference_loss(orig, unl, 0.7)
    assert jnp.allclose(loss, ref, atol=1e-5, rtol=1e-5), (loss, ref)

    # Case 2: enough rows to exercise multiple blocks, the parallel core axis,
    # per-core partial sums, and the partial-block row mask (N = 9000 > bn).
    orig2 = jax.random.normal(k3, (3, 3000, 32), dtype=jnp.float32)
    unl2 = orig2 + 0.5 * jax.random.normal(k4, (3, 3000, 32), dtype=jnp.float32)
    loss2 = jax.block_until_ready(temporal_consistency_loss(orig2, unl2, 0.7))
    ref2 = _reference_loss(orig2, unl2, 0.7)
    assert jnp.allclose(loss2, ref2, atol=1e-5, rtol=1e-5), (loss2, ref2)

    print("KERNEL_OK")
</pallas_src>

<mosaic_0001>
module attributes {stable_mosaic.version = 11 : i64} {
  func.func @_cos_loss_kernel(%arg0: i32, %arg1: i32, %arg2: memref<32x32xf32, #tpu.memory_space<vmem>>, %arg3: memref<32x32xf32, #tpu.memory_space<vmem>>, %arg4: memref<1x8x128xf32, #tpu.memory_space<vmem>>, %arg5: memref<32x1xf32, #tpu.memory_space<vmem>>) attributes {dimension_semantics = [#tpu.dimension_semantics<parallel>, #tpu.dimension_semantics<arbitrary>], iteration_bounds = array<i64: 1, 1>, scalar_prefetch = 0 : i64, scratch_operands = 1 : i64, tpu.core_type = #tpu.core_type<tc>, window_params = [{transform_indices = @transform_0, window_bounds = array<i64: 32, 32>}, {transform_indices = @transform_1, window_bounds = array<i64: 32, 32>}, {transform_indices = @transform_2, window_bounds = array<i64: 1, 8, 128>}]} {
    %c0_i32 = arith.constant 0 : i32
    %0 = arith.cmpi eq, %arg1, %c0_i32 : i32
    %1 = arith.extui %0 : i1 to i32
    %c0_i32_0 = arith.constant 0 : i32
    %2 = arith.cmpi ne, %1, %c0_i32_0 : i32
    scf.if %2 {
      %cst_18 = arith.constant 0.000000e+00 : f32
      %41 = vector.broadcast %cst_18 : f32 to vector<32x1xf32>
      %c0_19 = arith.constant 0 : index
      %c0_20 = arith.constant 0 : index
      %42 = vector.load %arg5[%c0_19, %c0_20] : memref<32x1xf32, #tpu.memory_space<vmem>>, vector<32x1xf32>
      tpu.vector_store %arg5[%c0_19, %c0_20], %41 {strides = array<i32>} : memref<32x1xf32, #tpu.memory_space<vmem>>, vector<32x1xf32>,
    } else {
    }
    %c0 = arith.constant 0 : index
    %c0_1 = arith.constant 0 : index
    %3 = vector.load %arg2[%c0, %c0_1] : memref<32x32xf32, #tpu.memory_space<vmem>>, vector<32x32xf32>
    %c0_2 = arith.constant 0 : index
    %c0_3 = arith.constant 0 : index
    %4 = vector.load %arg3[%c0_2, %c0_3] : memref<32x32xf32, #tpu.memory_space<vmem>>, vector<32x32xf32>
    %5 = arith.mulf %3, %4 : vector<32x32xf32>
    %cst = arith.constant dense<0.000000e+00> : vector<32xf32>
    %6 = vector.multi_reduction <add>, %5, %cst [1] : vector<32x32xf32> to vector<32xf32>
    %7 = vector.shape_cast %6 : vector<32xf32> to vector<32x1xf32>
    %8 = arith.mulf %3, %3 : vector<32x32xf32>
    %cst_4 = arith.constant dense<0.000000e+00> : vector<32xf32>
    %9 = vector.multi_reduction <add>, %8, %cst_4 [1] : vector<32x32xf32> to vector<32xf32>
    %10 = vector.shape_cast %9 : vector<32xf32> to vector<32x1xf32>
    %11 = arith.mulf %4, %4 : vector<32x32xf32>
    %cst_5 = arith.constant dense<0.000000e+00> : vector<32xf32>
    %12 = vector.multi_reduction <add>, %11, %cst_5 [1] : vector<32x32xf32> to vector<32xf32>
    %13 = vector.shape_cast %12 : vector<32xf32> to vector<32x1xf32>
    %cst_6 = arith.constant 1.000000e-16 : f32
    %14 = vector.broadcast %cst_6 : f32 to vector<32x1xf32>
    %15 = arith.maximumf %10, %14 : vector<32x1xf32>
    %cst_7 = arith.constant 1.000000e-16 : f32
    %16 = vector.broadcast %cst_7 : f32 to vector<32x1xf32>
    %17 = arith.maximumf %13, %16 : vector<32x1xf32>
    %18 = arith.mulf %15, %17 : vector<32x1xf32>
    %19 = math.rsqrt %18 : vector<32x1xf32>
    %20 = arith.mulf %7, %19 : vector<32x1xf32>
    %cst_8 = arith.constant 0.699999988 : f32
    %21 = vector.broadcast %cst_8 : f32 to vector<32x1xf32>
    %22 = arith.subf %20, %21 : vector<32x1xf32>
    %cst_9 = arith.constant 0.000000e+00 : f32
    %23 = vector.broadcast %cst_9 : f32 to vector<32x1xf32>
    %24 = arith.maximumf %22, %23 : vector<32x1xf32>
    %c1_i32 = arith.constant 1 : i32
    %25 = arith.muli %arg0, %c1_i32 : i32
    %26 = arith.addi %25, %arg1 : i32
    %c32_i32 = arith.constant 32 : i32
    %27 = arith.muli %26, %c32_i32 : i32
    %28 = tpu.iota {dimensions = array<i32: 0>} : vector<32x1xi32>
    %29 = vector.broadcast %27 : i32 to vector<32x1xi32>
    %30 = arith.addi %29, %28 : vector<32x1xi32>
    %c0_10 = arith.constant 0 : index
    %c0_11 = arith.constant 0 : index
    %31 = vector.load %arg5[%c0_10, %c0_11] : memref<32x1xf32, #tpu.memory_space<vmem>>, vector<32x1xf32>
    %c32_i32_12 = arith.constant 32 : i32
    %32 = vector.broadcast %c32_i32_12 : i32 to vector<32x1xi32>
    %33 = arith.cmpi slt, %30, %32 : vector<32x1xi32>
    %cst_13 = arith.constant 0.000000e+00 : f32
    %34 = vector.broadcast %cst_13 : f32 to vector<32x1xf32>
    %35 = arith.select %33, %24, %34 : vector<32x1xi1>, vector<32x1xf32>
    %36 = arith.addf %31, %35 : vector<32x1xf32>
    %c0_14 = arith.constant 0 : index
    %c0_15 = arith.constant 0 : index
    %37 = vector.load %arg5[%c0_14, %c0_15] : memref<32x1xf32, #tpu.memory_space<vmem>>, vector<32x1xf32>
    tpu.vector_store %arg5[%c0_14, %c0_15], %36 {strides = array<i32>} : memref<32x1xf32, #tpu.memory_space<vmem>>, vector<32x1xf32>,
    %c0_i32_16 = arith.constant 0 : i32
    %38 = arith.cmpi eq, %arg1, %c0_i32_16 : i32
    %39 = arith.extui %38 : i1 to i32
    %c0_i32_17 = arith.constant 0 : i32
    %40 = arith.cmpi ne, %39, %c0_i32_17 : i32
    scf.if %40 {
      %c0_18 = arith.constant 0 : index
      %c0_19 = arith.constant 0 : index
      %41 = vector.load %arg5[%c0_18, %c0_19] : memref<32x1xf32, #tpu.memory_space<vmem>>, vector<32x1xf32>
      %42 = vector.shape_cast %41 : vector<32x1xf32> to vector<1x32x1xf32>
      %cst_20 = arith.constant dense<0.000000e+00> : vector<1xf32>
      %43 = vector.multi_reduction <add>, %42, %cst_20 [1, 2] : vector<1x32x1xf32> to vector<1xf32>
      %44 = vector.shape_cast %43 : vector<1xf32> to vector<1x1x1xf32>
      %45 = vector.extract %44[0, 0, 0] : f32 from vector<1x1x1xf32>
      %46 = vector.broadcast %45 : f32 to vector<1x8x128xf32>
      %c0_21 = arith.constant 0 : index
      %c0_22 = arith.constant 0 : index
      %c0_23 = arith.constant 0 : index
      %47 = vector.load %arg4[%c0_21, %c0_22, %c0_23] : memref<1x8x128xf32, #tpu.memory_space<vmem>>, vector<1x8x128xf32>
      tpu.vector_store %arg4[%c0_21, %c0_22, %c0_23], %46 {strides = array<i32>} : memref<1x8x128xf32, #tpu.memory_space<vmem>>, vector<1x8x128xf32>,
    } else {
    }
    return
  }
  func.func @transform_0(%arg0: i32, %arg1: i32) -> (i32, i32) {
    %c1_i32 = arith.constant 1 : i32
    %0 = arith.muli %arg0, %c1_i32 : i32
    %1 = arith.addi %0, %arg1 : i32
    %c0_i32 = arith.constant 0 : i32
    %c0_i32_0 = arith.constant 0 : i32
    return %1, %c0_i32 : i32, i32
  }
  func.func @transform_1(%arg0: i32, %arg1: i32) -> (i32, i32) {
    %c1_i32 = arith.constant 1 : i32
    %0 = arith.muli %arg0, %c1_i32 : i32
    %1 = arith.addi %0, %arg1 : i32
    %c0_i32 = arith.constant 0 : i32
    %c0_i32_0 = arith.constant 0 : i32
    return %1, %c0_i32 : i32, i32
  }
  func.func @transform_2(%arg0: i32, %arg1: i32) -> (i32, i32, i32) {
    %c0_i32 = arith.constant 0 : i32
    %c0_i32_0 = arith.constant 0 : i32
    %c0_i32_1 = arith.constant 0 : i32
    return %arg0, %c0_i32, %c0_i32_0 : i32, i32, i32
  }
}

</mosaic_0001>

<llo_original>
// kernel: tpu_custom_call.1
$region0: #{tpu_custom_call.1}
  #allocation0 [shape = 'u32[]', space=smem, size = 0x4, offset = 0x4, fixed_abs, tag = 'smem constant byte address 0x4 - core index']
  #allocation1 [shape = 'u32[144,128]{1,0:T(1,128)}', space=vmem, size = 0x12000, scoped, tag = 'internal scratch']
  #allocation2 [shape = 'f32[32,1]{1,0:T(8,128)}', space=vmem, size = 0x4000, scoped, tag = 'scratch operand']
  %s0 = inlined_call_operand.hbm [shape: f32[32,32], index: 0, kind: input, shape index: {}]
  %s1 = inlined_call_operand.hbm [shape: f32[32,32], index: 1, kind: input, shape index: {}]
  %s2 = inlined_call_operand.hbm [shape: f32[1,8,128], index: 2, kind: output, shape index: {}]
  %s3 = sld [smem:[#allocation0]]
  $region34: #{tpu_custom_call.1} parent=0
    _
  %s5 = ssub.s32 1, %s3
  %s6 = scalar_select 0, %s5, %s3
  $region1: #{tpu_custom_call.1} parent=0
    #allocation3 [shape = 'u8[16384]{0}', space=vmem, size = 0x4000, scoped, tag = 'input window, operand 0, single buffered']
    #allocation4 [shape = 's32[1]{0}', space=sflag, size = 0x4, scoped, tag = 'scoped memory for tpu_custom_call.1']
    #allocation5 [shape = 's32[1]{0}', space=sflag, size = 0x4, scoped, tag = 'scoped memory for tpu_custom_call.1']
    #allocation6 [shape = 'u8[16384]{0}', space=vmem, size = 0x4000, scoped, tag = 'input window, operand 1, single buffered']
    #allocation7 [shape = 's32[1]{0}', space=sflag, size = 0x4, scoped, tag = 'scoped memory for tpu_custom_call.1']
    #allocation8 [shape = 'u8[4096]{0}', space=vmem, size = 0x1000, scoped, tag = 'output window, operand 0, single buffered']
    %7 = vsyncpa [#allocation4], 0
    %8 = vsyncpa [#allocation7], 0
    %9 = vsyncpa [#allocation5], 0
    // Predicated region
    $region2: #{tpu_custom_call.1} parent=1 // pred_check
      _
    $region3: #{tpu_custom_call.1} parent=1 // pred_check_branch
      %11 = sbr.rel (0) target = $region5
    $region4: #{tpu_custom_call.1} parent=1 // pred_region
      %s12 = sadd.s32 0, 0
      %s13 = smul.u32 4, %s12
      %s15 = ssub.s32 512, 512
      %16 = vsyncadd [#allocation4], %s15
      %s17 = smul.addr %s13, 128
      %s18 = scalar_lea.hbm %s0, %s17
      %s19 = sshll.u32 [#allocation3], 4
      %s20 = int_to_ptr.vmem [resolvable:$true] %s19
      %25 = dma.hbm_to_vmem [thread:$0]  %s18, 512, %s20, [#allocation4], 128, 128, 8
    $region5: #{tpu_custom_call.1} parent=1 // pred_fallthru
      _
    // Predicated region
    $region6: #{tpu_custom_call.1} parent=1 // pred_check
      _
    $region7: #{tpu_custom_call.1} parent=1 // pred_check_branch
      %27 = sbr.rel (0) target = $region9
    $region8: #{tpu_custom_call.1} parent=1 // pred_region
      %s28 = sadd.s32 0, 0
      %s29 = smul.u32 4, %s28
      %s31 = ssub.s32 512, 512
      %32 = vsyncadd [#allocation7], %s31
      %s33 = smul.addr %s29, 128
      %s34 = scalar_lea.hbm %s1, %s33
      %s35 = sshll.u32 [#allocation6], 4
      %s36 = int_to_ptr.vmem [resolvable:$true] %s35
      %41 = dma.hbm_to_vmem [thread:$0]  %s34, 512, %s36, [#allocation7], 128, 128, 8
    $region9: #{tpu_custom_call.1} parent=1 // pred_fallthru
      _
    // Predicated region
    $region10: #{tpu_custom_call.1} parent=1 // pred_check
      _
    $region11: #{tpu_custom_call.1} parent=1 // pred_check_branch
      %43 = sbr.rel (0) target = $region13
    $region12: #{tpu_custom_call.1} parent=1 // pred_region
      %44 = dma.done [#allocation4], 512
    $region13: #{tpu_custom_call.1} parent=1 // pred_fallthru
      _
    // Predicated region
    $region14: #{tpu_custom_call.1} parent=1 // pred_check
      _
    $region15: #{tpu_custom_call.1} parent=1 // pred_check_branch
      %46 = sbr.rel (0) target = $region17
    $region16: #{tpu_custom_call.1} parent=1 // pred_region
      %47 = dma.done [#allocation7], 512
    $region17: #{tpu_custom_call.1} parent=1 // pred_fallthru
      _
    %s48 = sadd.s32 0, 0
    %s49 = smul.u32 4, %s48
    %s50 = sadd.s32 0, 0
    %s51 = smul.u32 4, %s50
    %p52 = scmp.eq.s32.totalorder 0, 0
    // Predicated region
    $region18: #{tpu_custom_call.1} parent=1 // pred_check
      %p53 = pneg %p52
    $region19: #{tpu_custom_call.1} parent=1 // pred_check_branch
      %55 = sbr.rel (%p53) target = $region21
    $region20: #{tpu_custom_call.1} parent=1 // pred_region
      %vm56 = vcmask 7168
      %57 = vst.msk [vmem:[#allocation2] sm:$0xff] %vm56, 0.0
      %58 = vst.msk [vmem:[#allocation2 + $0x8] sm:$0xff] %vm56, 0.0
      %59 = vst.msk [vmem:[#allocation2 + $0x10] sm:$0xff] %vm56, 0.0
      %60 = vst.msk [vmem:[#allocation2 + $0x18] sm:$0xff] %vm56, 0.0
    $region21: #{tpu_custom_call.1} parent=1 // pred_fallthru
      _
    %v61 = vld [vmem:[#allocation3] sm:$0xff]
    %v62 = vld [vmem:[#allocation3 + $0x8] sm:$0xff]
    %v63 = vld [vmem:[#allocation3 + $0x10] sm:$0xff]
    %v64 = vld [vmem:[#allocation3 + $0x18] sm:$0xff]
    %v65 = vld [vmem:[#allocation6] sm:$0xff]
    %v66 = vld [vmem:[#allocation6 + $0x8] sm:$0xff]
    %v67 = vld [vmem:[#allocation6 + $0x10] sm:$0xff]
    %v68 = vld [vmem:[#allocation6 + $0x18] sm:$0xff]
    %v69 = vmul.f32 %v61, %v65
    %v70 = vmul.f32 %v62, %v66
    %v71 = vmul.f32 %v63, %v67
    %v72 = vmul.f32 %v64, %v68
    %vm73 = vcmask 261120
    %v74 = vsel %vm73, %v69, 0.0
    %75 = vadd.xlane.f32.xlu0 %v74
    %v76 = vpop.xlane.xlu0 %75
    %v77 = vsel %vm73, %v70, 0.0
    %78 = vadd.xlane.f32.xlu0 %v77
    %v79 = vpop.xlane.xlu0 %78
    %v80 = vsel %vm73, %v71, 0.0
    %81 = vadd.xlane.f32.xlu0 %v80
    %v82 = vpop.xlane.xlu0 %81
    %v83 = vsel %vm73, %v72, 0.0
    %84 = vadd.xlane.f32.xlu0 %v83
    %v85 = vpop.xlane.xlu0 %84
    %v86 = vmul.f32 %v61, %v61
    %v87 = vmul.f32 %v62, %v62
    %v88 = vmul.f32 %v63, %v63
    %v89 = vmul.f32 %v64, %v64
    %v90 = vsel %vm73, %v86, 0.0
    %91 = vadd.xlane.f32.xlu0 %v90
    %v92 = vpop.xlane.xlu0 %91
    %v93 = vsel %vm73, %v87, 0.0
    %94 = vadd.xlane.f32.xlu0 %v93
    %v95 = vpop.xlane.xlu0 %94
    %v96 = vsel %vm73, %v88, 0.0
    %97 = vadd.xlane.f32.xlu0 %v96
    %v98 = vpop.xlane.xlu0 %97
    %v99 = vsel %vm73, %v89, 0.0
    %100 = vadd.xlane.f32.xlu0 %v99
    %v101 = vpop.xlane.xlu0 %100
    %v102 = vmul.f32 %v65, %v65
    %v103 = vmul.f32 %v66, %v66
    %v104 = vmul.f32 %v67, %v67
    %v105 = vmul.f32 %v68, %v68
    %v106 = vsel %vm73, %v102, 0.0
    %107 = vadd.xlane.f32.xlu0 %v106
    %v108 = vpop.xlane.xlu0 %107
    %v109 = vsel %vm73, %v103, 0.0
    %110 = vadd.xlane.f32.xlu0 %v109
    %v111 = vpop.xlane.xlu0 %110
    %v112 = vsel %vm73, %v104, 0.0
    %113 = vadd.xlane.f32.xlu0 %v112
    %v114 = vpop.xlane.xlu0 %113
    %v115 = vsel %vm73, %v105, 0.0
    %116 = vadd.xlane.f32.xlu0 %v115
    %v117 = vpop.xlane.xlu0 %116
    %v118 = vmax.f32 %v92, 1e-16
    %v119 = vmax.f32 %v95, 1e-16
    %v120 = vmax.f32 %v98, 1e-16
    %v121 = vmax.f32 %v101, 1e-16
    %v122 = vmax.f32 %v108, 1e-16
    %v123 = vmax.f32 %v111, 1e-16
    %v124 = vmax.f32 %v114, 1e-16
    %v125 = vmax.f32 %v117, 1e-16
    %v126 = vmul.f32 %v118, %v122
    %v127 = vmul.f32 %v119, %v123
    %v128 = vmul.f32 %v120, %v124
    %v129 = vmul.f32 %v121, %v125
    %v130 = vrsqrt.pop %v126
    %v131 = vrsqrt.pop %v127
    %v132 = vrsqrt.pop %v128
    %v133 = vrsqrt.pop %v129
    %v134 = vmul.f32 %v76, %v130
    %v135 = vmul.f32 %v79, %v131
    %v136 = vmul.f32 %v82, %v132
    %v137 = vmul.f32 %v85, %v133
    %v138 = vsub.f32 %v134, 0.7
    %v139 = vsub.f32 %v135, 0.7
    %v140 = vsub.f32 %v136, 0.7
    %v141 = vsub.f32 %v137, 0.7
    %v142 = vmax.f32 %v138, 0.0
    %v143 = vmax.f32 %v139, 0.0
    %v144 = vmax.f32 %v140, 0.0
    %v145 = vmax.f32 %v141, 0.0
    %s146 = sadd.s32 0, 0
    %s147 = smul.u32 %s146, 32
    %v148 = vlaneseq
    %v149 = vshrl.u32 %v148, 7
    %v150 = vadd.s32 %v149, 8
    %v151 = vadd.s32 %v149, 16
    %v152 = vadd.s32 %v149, 24
    %v153 = vstv %s147
    %v154 = vadd.s32 %v153, %v149
    %v155 = vadd.s32 %v153, %v150
    %v156 = vadd.s32 %v153, %v151
    %v157 = vadd.s32 %v153, %v152
    %v158 = vld [vmem:[#allocation2] sm:$0xff]
    %v159 = vld [vmem:[#allocation2 + $0x8] sm:$0xff]
    %v160 = vld [vmem:[#allocation2 + $0x10] sm:$0xff]
    %v161 = vld [vmem:[#allocation2 + $0x18] sm:$0xff]
    %vm162 = vcmp.lt.s32.totalorder %v154, 32
    %vm163 = vcmp.lt.s32.totalorder %v155, 32
    %vm164 = vcmp.lt.s32.totalorder %v156, 32
    %vm165 = vcmp.lt.s32.totalorder %v157, 32
    %v166 = vsel %vm162, %v142, 0.0
    %v167 = vsel %vm163, %v143, 0.0
    %v168 = vsel %vm164, %v144, 0.0
    %v169 = vsel %vm165, %v145, 0.0
    %v170 = vadd.f32 %v158, %v166
    %v171 = vadd.f32 %v159, %v167
    %v172 = vadd.f32 %v160, %v168
    %v173 = vadd.f32 %v161, %v169
    %vm174 = vcmask 7168
    %175 = vst.msk [vmem:[#allocation2] sm:$0xff] %vm174, %v170
    %176 = vst.msk [vmem:[#allocation2 + $0x8] sm:$0xff] %vm174, %v171
    %177 = vst.msk [vmem:[#allocation2 + $0x10] sm:$0xff] %vm174, %v172
    %178 = vst.msk [vmem:[#allocation2 + $0x18] sm:$0xff] %vm174, %v173
    // Predicated region
    $region22: #{tpu_custom_call.1} parent=1 // pred_check
      %p179 = pneg %p52
    $region23: #{tpu_custom_call.1} parent=1 // pred_check_branch
      %181 = sbr.rel (%p179) target = $region25
    $region24: #{tpu_custom_call.1} parent=1 // pred_region
      %v182 = vld [vmem:[#allocation2] sm:$0xff]
      %v183 = vld [vmem:[#allocation2 + $0x8] sm:$0xff]
      %v184 = vld [vmem:[#allocation2 + $0x10] sm:$0xff]
      %v185 = vld [vmem:[#allocation2 + $0x18] sm:$0xff]
      %v186 = vsel %vm174, %v182, 0.0
      %v187 = vsel %vm174, %v183, 0.0
      %v188 = vadd.f32 %v186, %v187
      %v189 = vsel %vm174, %v184, 0.0
      %v190 = vadd.f32 %v188, %v189
      %v191 = vsel %vm174, %v185, 0.0
      %v192 = vadd.f32 %v190, %v191
      %193 = vadd.xlane.f32.xlu0 %v192
      %v194 = vpop.xlane.xlu0 %193
      %v195 = vrot.slane %v194, 4
      %v196 = vadd.f32 %v194, %v195
      %v197 = vrot.slane %v196, 2
      %v198 = vadd.f32 %v196, %v197
      %v199 = vrot.slane %v198, 1
      %v200 = vadd.f32 %v198, %v199
      %s201 = vtos %v200
      %v202 = vstv %s201
      %203 = vst [vmem:[#allocation8] sm:$0xff] %v202
    $region25: #{tpu_custom_call.1} parent=1 // pred_fallthru
      _
    // Predicated region
    $region26: #{tpu_custom_call.1} parent=1 // pred_check
      _
    $region27: #{tpu_custom_call.1} parent=1 // pred_check_branch
      %205 = sbr.rel (0) target = $region29
    $region28: #{tpu_custom_call.1} parent=1 // pred_region
      %s207 = ssub.s32 128, 128
      %208 = vsyncadd [#allocation5], %s207
      %s210 = sshll.u32 [#allocation8], 4
      %s211 = int_to_ptr.vmem [resolvable:$true] %s210
      %213 = dma.vmem_to_hbm [thread:$0]  %s211, 128, %s2, [#allocation5]
    $region29: #{tpu_custom_call.1} parent=1 // pred_fallthru
      _
    // Predicated region
    $region30: #{tpu_custom_call.1} parent=1 // pred_check
      _
    $region31: #{tpu_custom_call.1} parent=1 // pred_check_branch
      %215 = sbr.rel (0) target = $region33
    $region32: #{tpu_custom_call.1} parent=1 // pred_region
      %216 = dma.done [#allocation5], 128
    $region33: #{tpu_custom_call.1} parent=1 // pred_fallthru
      _
    %217 = vsyncpa [#allocation4], 1
    %218 = vsyncpa [#allocation7], 1
    %219 = vsyncpa [#allocation5], 1

</llo_original>
